<compile_context>
chip_gen: v6e
topology: v6e:2x2x1
jax: 0.10.0
libtpu: 0.0.40
codegen_flags: <defaults>
</compile_context>

<pallas_src>
import functools

import jax
import jax.numpy as jnp
from jax.experimental import pallas as pl
from jax.experimental.pallas import tpu as pltpu


def _round_up(n, m):
    return ((n + m - 1) // m) * m


def _einsum_linear_kernel(x_ref, w_ref, o_ref):
    # x_ref: (tm, K)  rows of the flattened (B*S, K) input
    # w_ref: (K, Dp)  shared weight, lane-dense (Dp % 128 == 0)
    # o_ref: (tm, Dp) lane-dense output tile
    o_ref[...] = jnp.dot(
        x_ref[...], w_ref[...], preferred_element_type=jnp.float32
    ).astype(o_ref.dtype)


@functools.partial(jax.jit, static_argnames=("tm", "compute_dtype", "out_dtype"))
def einsum_linear(x, w, *, tm=512, compute_dtype=jnp.bfloat16, out_dtype=None):
    """z[i, j, l] = sum_k x[i, j, k] * w[k, l]   (einsum 'ijk,kl->ijl')."""
    B, S, K = x.shape
    K2, D = w.shape
    assert K == K2, f"contraction mismatch: {K} vs {K2}"

    if out_dtype is None:
        out_dtype = jnp.result_type(x.dtype, w.dtype)

    # Flatten batch into M so every grid step feeds the MXU a large tile.
    M = B * S
    x2 = x.reshape(M, K).astype(compute_dtype)
    w2 = w.astype(compute_dtype)

    # Tile sizes: tm rows per step (multiple of 8 sublanes), D padded to a
    # multiple of 128 lanes for unmasked stores, M padded to a multiple of tm.
    tm = min(tm, _round_up(M, 8))
    Mp = _round_up(M, tm)
    Dp = _round_up(D, 128)
    if Mp != M:
        x2 = jnp.pad(x2, ((0, Mp - M), (0, 0)))
    if Dp != D:
        w2 = jnp.pad(w2, ((0, 0), (0, Dp - D)))

    grid = (Mp // tm,)

    in_bytes = jnp.dtype(compute_dtype).itemsize
    out_bytes = jnp.dtype(out_dtype).itemsize
    # Double-buffered working set + headroom; stay within v7x's 64 MiB VMEM.
    vmem_needed = 2 * (tm * K * in_bytes + K * Dp * in_bytes + tm * Dp * out_bytes)
    vmem_limit = int(min(max(vmem_needed + (2 << 20), 32 << 20), 64 << 20))

    cost = pl.CostEstimate(
        flops=2 * Mp * K * Dp,
        transcendentals=0,
        bytes_accessed=Mp * K * in_bytes + K * Dp * in_bytes + Mp * Dp * out_bytes,
    )

    out = pl.pallas_call(
        _einsum_linear_kernel,
        out_shape=jax.ShapeDtypeStruct((Mp, Dp), out_dtype),
        grid_spec=pltpu.PrefetchScalarGridSpec(
            num_scalar_prefetch=0,
            grid=grid,
            in_specs=[
                pl.BlockSpec((tm, K), lambda i: (i, 0)),   # M-tile of x
                pl.BlockSpec((K, Dp), lambda i: (0, 0)),   # resident weight
            ],
            out_specs=pl.BlockSpec((tm, Dp), lambda i: (i, 0)),
        ),
        compiler_params=pltpu.CompilerParams(
            dimension_semantics=("parallel",),
            vmem_limit_bytes=vmem_limit,
        ),
        cost_estimate=cost,
    )(x2, w2)

    # Strip padding and restore the (B, S, D) einsum output shape.
    return out[:M, :D].reshape(B, S, D)


if __name__ == "__main__":
    # Small shapes consistent with the module's constructor.
    batch_size = 2
    num_patches = 4          # -> sequence length S = num_patches**2 = 16
    patch_size = 4
    channels = 4             # -> K = patch_size**2 * channels = 64
    dim = 32

    S = num_patches ** 2
    K = patch_size ** 2 * channels

    key = jax.random.PRNGKey(0)
    kx, kw = jax.random.split(key)
    x = jax.random.normal(kx, (batch_size, S, K), dtype=jnp.float32)
    # Deterministic in-script weight init (module builds w internally).
    # TODO(synk): original forward() is TVM glue with mismatched buffer shapes;
    # we implement the declared einsum contraction, not the TVM build/launch.
    w = jax.random.normal(kw, (K, dim), dtype=jnp.float32) * 0.02

    z = einsum_linear(x, w)
    z = jax.block_until_ready(z)
    assert z.shape == (batch_size, S, dim)

    # Reference at matching (bf16-input, f32-accumulate) precision: tight check.
    xb = x.astype(jnp.bfloat16).astype(jnp.float32)
    wb = w.astype(jnp.bfloat16).astype(jnp.float32)
    z_ref_bf16 = jnp.einsum("ijk,kl->ijl", xb, wb)
    assert jnp.allclose(z, z_ref_bf16, atol=1e-4, rtol=1e-4)

    # Loose sanity check against the full-f32 reference.
    z_ref_f32 = jnp.einsum("ijk,kl->ijl", x, w)
    assert jnp.allclose(z, z_ref_f32, atol=2e-2, rtol=5e-2)

    print("KERNEL_OK")
</pallas_src>

<mosaic_0001>
module attributes {stable_mosaic.version = 11 : i64} {
  func.func @_einsum_linear_kernel(%arg0: i32, %arg1: memref<32x64xbf16, #tpu.memory_space<vmem>>, %arg2: memref<64x128xbf16, #tpu.memory_space<vmem>>, %arg3: memref<32x128xf32, #tpu.memory_space<vmem>>) attributes {dimension_semantics = [#tpu.dimension_semantics<parallel>], iteration_bounds = array<i64: 1>, scalar_prefetch = 0 : i64, scratch_operands = 0 : i64, tpu.core_type = #tpu.core_type<tc>, window_params = [{transform_indices = @transform_0, window_bounds = array<i64: 32, 64>}, {pipeline_mode = #tpu.pipeline_mode<synchronous>, transform_indices = @transform_1, window_bounds = array<i64: 64, 128>}, {transform_indices = @transform_2, window_bounds = array<i64: 32, 128>}]} {
    %c0 = arith.constant 0 : index
    %c0_0 = arith.constant 0 : index
    %0 = vector.load %arg1[%c0, %c0_0] : memref<32x64xbf16, #tpu.memory_space<vmem>>, vector<32x64xbf16>
    %c0_1 = arith.constant 0 : index
    %c0_2 = arith.constant 0 : index
    %1 = vector.load %arg2[%c0_1, %c0_2] : memref<64x128xbf16, #tpu.memory_space<vmem>>, vector<64x128xbf16>
    %cst = arith.constant dense<0.000000e+00> : vector<32x128xf32>
    %2 = tpu.matmul %0, %1, %cst {dimension_numbers = #tpu.dot_dimension_numbers<[1], [0], [0], [1], [0, 0, 1, 1], [], []>} : vector<32x64xbf16>, vector<64x128xbf16>, vector<32x128xf32> -> vector<32x128xf32>
    %c0_3 = arith.constant 0 : index
    %c0_4 = arith.constant 0 : index
    %3 = vector.load %arg3[%c0_3, %c0_4] : memref<32x128xf32, #tpu.memory_space<vmem>>, vector<32x128xf32>
    tpu.vector_store %arg3[%c0_3, %c0_4], %2 {strides = array<i32>} : memref<32x128xf32, #tpu.memory_space<vmem>>, vector<32x128xf32>,
    return
  }
  func.func @transform_0(%arg0: i32) -> (i32, i32) {
    %c0_i32 = arith.constant 0 : i32
    %c0_i32_0 = arith.constant 0 : i32
    return %arg0, %c0_i32 : i32, i32
  }
  func.func @transform_1(%arg0: i32) -> (i32, i32) {
    %c0_i32 = arith.constant 0 : i32
    %c0_i32_0 = arith.constant 0 : i32
    %c0_i32_1 = arith.constant 0 : i32
    return %c0_i32, %c0_i32_0 : i32, i32
  }
  func.func @transform_2(%arg0: i32) -> (i32, i32) {
    %c0_i32 = arith.constant 0 : i32
    %c0_i32_0 = arith.constant 0 : i32
    return %arg0, %c0_i32 : i32, i32
  }
}

</mosaic_0001>

<llo_original>
// kernel: einsum_linear.1
$region0: #{einsum_linear.1}
  #allocation0 [shape = 'u32[]', space=smem, size = 0x4, offset = 0x4, fixed_abs, tag = 'smem constant byte address 0x4 - core index']
  #allocation1 [shape = 'u32[144,128]{1,0:T(1,128)}', space=vmem, size = 0x12000, scoped, tag = 'internal scratch']
  %s0 = inlined_call_operand.vmem [shape: bf16[32,64], index: 0, kind: input, shape index: {}]
  %s1 = inlined_call_operand.vmem [shape: bf16[64,128], index: 1, kind: input, shape index: {}]
  %s2 = inlined_call_operand.hbm [shape: f32[32,128], index: 2, kind: output, shape index: {}]
  %s3 = sld [smem:[#allocation0]]
  $region18: #{einsum_linear.1} parent=0
    _
  %s5 = ssub.s32 1, %s3
  %s6 = scalar_select 0, %s5, %s3
  $region1: #{einsum_linear.1} parent=0
    #allocation2 [shape = 'u8[16384]{0}', space=vmem, size = 0x4000, scoped, tag = 'output window, operand 0, single buffered']
    #allocation3 [shape = 's32[1]{0}', space=sflag, size = 0x4, scoped, tag = 'scoped memory for einsum_linear.1']
    %7 = vsyncpa [#allocation3], 0
    // Predicated region
    $region2: #{einsum_linear.1} parent=1 // pred_check
      _
    $region3: #{einsum_linear.1} parent=1 // pred_check_branch
      %9 = sbr.rel (0) target = $region5
    $region4: #{einsum_linear.1} parent=1 // pred_region
      _
    $region5: #{einsum_linear.1} parent=1 // pred_fallthru
      _
    // Predicated region
    $region6: #{einsum_linear.1} parent=1 // pred_check
      _
    $region7: #{einsum_linear.1} parent=1 // pred_check_branch
      %11 = sbr.rel (0) target = $region9
    $region8: #{einsum_linear.1} parent=1 // pred_region
      _
    $region9: #{einsum_linear.1} parent=1 // pred_fallthru
      _
    %v13 = vld [vmem:[%s0] sm:$0xf]
    %v14 = vld [vmem:[%s0 + $0x4] sm:$0xf]
    %v15 = vld [vmem:[%s0 + $0x8] sm:$0xf]
    %v16 = vld [vmem:[%s0 + $0xc] sm:$0xf]
    %v17 = vld [vmem:[%s1] sm:$0xf]
    %v18 = vld [vmem:[%s1 + $0x4] sm:$0xf]
    %v19 = vld [vmem:[%s1 + $0x8] sm:$0xf]
    %v20 = vld [vmem:[%s1 + $0xc] sm:$0xf]
    %v21 = vld [vmem:[%s1 + $0x10] sm:$0xf]
    %v22 = vld [vmem:[%s1 + $0x14] sm:$0xf]
    %v23 = vld [vmem:[%s1 + $0x18] sm:$0xf]
    %v24 = vld [vmem:[%s1 + $0x1c] sm:$0xf]
    %v29 = vunpack.c.l.b16 %v13
    %v30 = vunpack.c.l.b16 %v14
    %v31 = vunpack.c.l.b16 %v15
    %v32 = vunpack.c.l.b16 %v16
    %v33 = vpack.c.b16 %v30, %v29
    %v34 = vpack.c.b16 %v32, %v31
    %v43 = vunpack.c.l.b16 %v17
    %v44 = vunpack.c.l.b16 %v18
    %v45 = vunpack.c.l.b16 %v19
    %v46 = vunpack.c.l.b16 %v20
    %v47 = vunpack.c.l.b16 %v21
    %v48 = vunpack.c.l.b16 %v22
    %v49 = vunpack.c.l.b16 %v23
    %v50 = vunpack.c.l.b16 %v24
    %v51 = vpack.c.b16 %v44, %v43
    %v52 = vpack.c.b16 %v46, %v45
    %v53 = vpack.c.b16 %v48, %v47
    %v54 = vpack.c.b16 %v50, %v49
    %vm59 = vcmask 523264
    %v61 = vsel %vm59, %v33, 0
    %v64 = vsel %vm59, %v34, 0
    %66 = vmatprep.subr.bf16.mxu0 0
    %67 = vmatpush1.bf16.msra.mxu0 0
    %68 = vmatprep.subr.bf16.mxu0 0
    %69 = vmatpush1.bf16.msra.mxu0 0
    %70 = vmatprep.subr.bf16.mxu0 0
    %71 = vmatpush1.bf16.msra.mxu0 0
    %72 = vmatprep.subr.bf16.mxu0 0
    %73 = vmatpush1.bf16.msra.mxu0 0
    %74 = vmatprep.subr.bf16.mxu0 0
    %75 = vmatpush1.bf16.msra.mxu0 %v54
    %76 = vmatprep.subr.bf16.mxu0 0
    %77 = vmatpush1.bf16.msra.mxu0 %v53
    %78 = vmatprep.subr.bf16.mxu0 0
    %79 = vmatpush1.bf16.msra.mxu0 %v52
    %80 = vmatprep.subr.bf16.mxu0 0
    %81 = vmatpush1.bf16.msra.mxu0 %v51
    %82 = vmatprep.subr.bf16.mxu0 0
    %83 = vmatpush2.bf16.msra.mxu0 0
    %84 = vmatprep.subr.bf16.mxu0 0
    %85 = vmatpush2.bf16.msra.mxu0 0
    %86 = vmatprep.subr.bf16.mxu0 0
    %87 = vmatpush2.bf16.msra.mxu0 0
    %88 = vmatprep.subr.bf16.mxu0 0
    %89 = vmatpush2.bf16.msra.mxu0 0
    %90 = vmatprep.subr.bf16.mxu0 0
    %91 = vmatpush2.bf16.msra.mxu0 0
    %92 = vmatprep.subr.bf16.mxu0 0
    %93 = vmatpush2.bf16.msra.mxu0 0
    %94 = vmatprep.subr.bf16.mxu0 0
    %95 = vmatpush2.bf16.msra.mxu0 0
    %96 = vmatprep.subr.bf16.mxu0 0
    %97 = vmatpush2.bf16.msra.mxu0 0
    %98 = vmatprep.mubr.bf16.mxu0 0
    %99 = vmatmul.mubr.bf16.gmra.mxu0 %v61
    %v100 = vpop.f32.mrf.mxu0
    %v101 = vadd.f32 0.0, %v100
    %v102 = vpop.f32.mrf.mxu0
    %v103 = vpop.f32.mrf.mxu0
    %v104 = vadd.f32 0.0, %v103
    %v105 = vpop.f32.mrf.mxu0
    %106 = vmatprep.mubr.bf16.mxu0 0
    %107 = vmatmul.mubr.bf16.gmra.mxu0 %v64
    %v108 = vpop.f32.mrf.mxu0
    %v109 = vadd.f32 0.0, %v108
    %v110 = vpop.f32.mrf.mxu0
    %v111 = vpop.f32.mrf.mxu0
    %v112 = vadd.f32 0.0, %v111
    %v113 = vpop.f32.mrf.mxu0
    %114 = vdwg.mxu0
    %115 = vst [vmem:[#allocation2] sm:$0xff] %v101
    %116 = vst [vmem:[#allocation2 + $0x8] sm:$0xff] %v104
    %117 = vst [vmem:[#allocation2 + $0x10] sm:$0xff] %v109
    %118 = vst [vmem:[#allocation2 + $0x18] sm:$0xff] %v112
    // Predicated region
    $region10: #{einsum_linear.1} parent=1 // pred_check
      _
    $region11: #{einsum_linear.1} parent=1 // pred_check_branch
      %120 = sbr.rel (0) target = $region13
    $region12: #{einsum_linear.1} parent=1 // pred_region
      %s122 = ssub.s32 512, 512
      %123 = vsyncadd [#allocation3], %s122
      %s124 = sshll.u32 [#allocation2], 4
      %s125 = int_to_ptr.vmem [resolvable:$true] %s124
      %130 = dma.vmem_to_hbm [thread:$0]  %s125, 512, %s2, [#allocation3], 128, 128, 8
    $region13: #{einsum_linear.1} parent=1 // pred_fallthru
      _
    // Predicated region
    $region14: #{einsum_linear.1} parent=1 // pred_check
      _
    $region15: #{einsum_linear.1} parent=1 // pred_check_branch
      %132 = sbr.rel (0) target = $region17
    $region16: #{einsum_linear.1} parent=1 // pred_region
      %133 = dma.done [#allocation3], 512
    $region17: #{einsum_linear.1} parent=1 // pred_fallthru
      _
    %134 = vsyncpa [#allocation3], 1

</llo_original>
